<compile_context>
chip_gen: v6e
topology: v6e:2x2x1
jax: 0.10.0
libtpu: 0.0.40
codegen_flags: <defaults>
</compile_context>

<pallas_src>
import jax
import jax.numpy as jnp
from jax.experimental import pallas as pl
from jax.experimental.pallas import tpu as pltpu

BN_EPS = 1e-5


def fused_bn_conv_kernel(x_ref, p_ref, o_ref):
    # x_ref: (2, 4) f32 in VMEM  -- channels x length (single-batch view).
    # p_ref: (32,)  f32 in SMEM  -- packed host-folded parameters:
    #        p[o*8 + i*3 + k] = W[o, i, k]   (effective conv weight, gamma folded in)
    #        p[o*8 + 6]       = B[o]         (effective bias, beta/b1/b2 folded in)
    # o_ref: (4, 2) f32 in VMEM  -- out channels x out length.
    x = x_ref[...]                                         # (2, 4)
    inv_l = 1.0 / x.shape[1]

    # ---- BatchNorm1d(2): training-mode batch statistics (biased variance) ----
    # var = E[x^2] - mean^2 so both reductions can overlap (latency, not count).
    # gamma/beta are folded into p host-side; only normalization happens here.
    mean = jnp.sum(x, axis=1, keepdims=True) * inv_l       # (2, 1)
    ex2 = jnp.sum(x * x, axis=1, keepdims=True) * inv_l    # (2, 1)
    var = ex2 - mean * mean
    xn = (x - mean) * jax.lax.rsqrt(var + BN_EPS)          # (2, 4)  rsqrt -> EUP

    # ---- Folded (pointwise + grouped) conv, output length 2 ----
    # out[o, t] = sum_{i,k} W[o,i,k] * xn[i, t+k] + B[o]
    # SMEM scalar * (1,2) vector FMAs; per-input-channel partial sums (tree).
    x0 = xn[0:1, :]                                        # (1, 4)
    x1 = xn[1:2, :]                                        # (1, 4)
    for o in range(4):                                     # fully unrolled
        base = o * 8
        r0 = (p_ref[base + 0] * x0[:, 0:2]
              + p_ref[base + 1] * x0[:, 1:3]) + p_ref[base + 2] * x0[:, 2:4]
        r1 = (p_ref[base + 3] * x1[:, 0:2]
              + p_ref[base + 4] * x1[:, 1:3]) + p_ref[base + 5] * x1[:, 2:4]
        o_ref[o:o + 1, :] = (r0 + p_ref[base + 6]) + r1


def fold_params(params):
    """Fold BN affine + pointwise conv + grouped conv into one 1-D f32[32] buffer."""
    gamma, beta, w1, b1, w2, b2 = params
    w1m = w1[:, :, 0]                     # (2, 2)  [out_c, in_c]
    w2m = w2[:, 0, :]                     # (4, 3)  [out_c, tap]
    grp = jnp.array([0, 0, 1, 1])         # output channel -> pointwise-conv channel
    # W[o, i, k] = w2m[o, k] * w1m[o//2, i] * gamma[i]
    W = w2m[:, None, :] * (w1m[grp] * gamma[None, :])[:, :, None]    # (4, 2, 3)
    # B[o] = (sum_k w2m[o,k]) * (sum_i w1m[o//2,i]*beta[i] + b1[o//2]) + b2[o]
    B = jnp.sum(w2m, axis=1) * (w1m[grp] @ beta + b1[grp]) + b2      # (4,)
    packed = jnp.zeros((4, 8), jnp.float32)
    packed = packed.at[:, 0:6].set(W.reshape(4, 6))
    packed = packed.at[:, 6].set(B)
    return packed.reshape(32)             # 1-D: SMEM pads to 128 B, not [8,128] words


def model_forward(x, params):
    """x: (1, 2, 4) f32 -> (1, 4, 2) f32."""
    n, c, l = x.shape
    assert (n, c, l) == (1, 2, 4)
    packed = fold_params(params)          # tiny XLA prologue per call (cheap)
    x2d = x[0]                            # (2, 4)
    out2d = pl.pallas_call(
        fused_bn_conv_kernel,
        out_shape=jax.ShapeDtypeStruct((4, 2), jnp.float32),
        in_specs=[pl.BlockSpec(memory_space=pltpu.MemorySpace.VMEM),
                  pl.BlockSpec(memory_space=pltpu.MemorySpace.SMEM)],
        out_specs=pl.BlockSpec(memory_space=pltpu.MemorySpace.VMEM),
    )(x2d, packed)
    return out2d[None]                    # (1, 4, 2)


def reference_forward(x, params):
    """Pure-JAX reference (plain XLA, for validation only)."""
    gamma, beta, w1, b1, w2, b2 = params
    mean = x.mean(axis=(0, 2), keepdims=True)
    var = ((x - mean) ** 2).mean(axis=(0, 2), keepdims=True)
    xn = (x - mean) / jnp.sqrt(var + BN_EPS)
    xn = xn * gamma[None, :, None] + beta[None, :, None]
    y = jax.lax.conv_general_dilated(
        xn, w1, (1,), 'VALID',
        dimension_numbers=('NCH', 'OIH', 'NCH')) + b1[None, :, None]
    out = jax.lax.conv_general_dilated(
        y, w2, (1,), 'VALID',
        dimension_numbers=('NCH', 'OIH', 'NCH'),
        feature_group_count=2) + b2[None, :, None]
    return out


def init_params():
    key = jax.random.PRNGKey(0)
    k1, k2, k3, k4 = jax.random.split(key, 4)
    # BatchNorm1d(2): default affine params
    gamma = jnp.ones((2,), jnp.float32)
    beta = jnp.zeros((2,), jnp.float32)
    # Conv1d(2, 2, 1): weight (2, 2, 1), bias (2,)
    w1 = jax.random.normal(k1, (2, 2, 1), jnp.float32) * 0.5
    b1 = jax.random.normal(k2, (2,), jnp.float32) * 0.1
    # Conv1d(2, 4, 3, groups=2): weight (4, 1, 3), bias (4,)
    w2 = jax.random.normal(k3, (4, 1, 3), jnp.float32) * 0.5
    b2 = jax.random.normal(k4, (4,), jnp.float32) * 0.1
    return gamma, beta, w1, b1, w2, b2


if __name__ == "__main__":
    params = init_params()
    x = jax.random.normal(jax.random.PRNGKey(0), (1, 2, 4), jnp.float32)

    out = jax.jit(model_forward)(x, params)
    out = jax.block_until_ready(out)

    ref = reference_forward(x, params)
    assert out.shape == (1, 4, 2), out.shape
    assert jnp.allclose(out, ref, atol=1e-4, rtol=1e-4), (out, ref)

    print("KERNEL_OK")
</pallas_src>

<mosaic_0001>
module attributes {stable_mosaic.version = 11 : i64} {
  func.func @fused_bn_conv_kernel(%arg0: memref<2x4xf32, #tpu.memory_space<vmem>>, %arg1: memref<32xf32, #tpu.memory_space<smem>>, %arg2: memref<4x2xf32, #tpu.memory_space<vmem>>) attributes {dimension_semantics = [], scalar_prefetch = 0 : i64, scratch_operands = 0 : i64, tpu.core_type = #tpu.core_type<tc>} {
    %c0 = arith.constant 0 : index
    %c0_0 = arith.constant 0 : index
    %0 = vector.load %arg0[%c0, %c0_0] : memref<2x4xf32, #tpu.memory_space<vmem>>, vector<2x4xf32>
    %cst = arith.constant dense<0.000000e+00> : vector<2xf32>
    %1 = vector.multi_reduction <add>, %0, %cst [1] : vector<2x4xf32> to vector<2xf32>
    %2 = vector.shape_cast %1 : vector<2xf32> to vector<2x1xf32>
    %cst_1 = arith.constant 2.500000e-01 : f32
    %3 = vector.broadcast %cst_1 : f32 to vector<2x1xf32>
    %4 = arith.mulf %2, %3 : vector<2x1xf32>
    %5 = arith.mulf %0, %0 : vector<2x4xf32>
    %cst_2 = arith.constant dense<0.000000e+00> : vector<2xf32>
    %6 = vector.multi_reduction <add>, %5, %cst_2 [1] : vector<2x4xf32> to vector<2xf32>
    %7 = vector.shape_cast %6 : vector<2xf32> to vector<2x1xf32>
    %cst_3 = arith.constant 2.500000e-01 : f32
    %8 = vector.broadcast %cst_3 : f32 to vector<2x1xf32>
    %9 = arith.mulf %7, %8 : vector<2x1xf32>
    %10 = arith.mulf %4, %4 : vector<2x1xf32>
    %11 = arith.subf %9, %10 : vector<2x1xf32>
    %12 = vector.broadcast %4 : vector<2x1xf32> to vector<2x4xf32>
    %13 = arith.subf %0, %12 : vector<2x4xf32>
    %cst_4 = arith.constant 9.99999974E-6 : f32
    %14 = vector.broadcast %cst_4 : f32 to vector<2x1xf32>
    %15 = arith.addf %11, %14 : vector<2x1xf32>
    %16 = math.rsqrt %15 : vector<2x1xf32>
    %17 = vector.broadcast %16 : vector<2x1xf32> to vector<2x4xf32>
    %18 = arith.mulf %13, %17 : vector<2x4xf32>
    %19 = vector.extract_strided_slice %18 {offsets = [0, 0], sizes = [1, 4], strides = [1, 1]} : vector<2x4xf32> to vector<1x4xf32>
    %20 = vector.extract_strided_slice %18 {offsets = [1, 0], sizes = [1, 4], strides = [1, 1]} : vector<2x4xf32> to vector<1x4xf32>
    %c0_5 = arith.constant 0 : index
    %21 = memref.load %arg1[%c0_5] : memref<32xf32, #tpu.memory_space<smem>>
    %22 = vector.extract_strided_slice %19 {offsets = [0, 0], sizes = [1, 2], strides = [1, 1]} : vector<1x4xf32> to vector<1x2xf32>
    %23 = vector.broadcast %21 : f32 to vector<1x2xf32>
    %24 = arith.mulf %23, %22 : vector<1x2xf32>
    %c1 = arith.constant 1 : index
    %25 = memref.load %arg1[%c1] : memref<32xf32, #tpu.memory_space<smem>>
    %26 = vector.extract_strided_slice %19 {offsets = [0, 1], sizes = [1, 2], strides = [1, 1]} : vector<1x4xf32> to vector<1x2xf32>
    %27 = vector.broadcast %25 : f32 to vector<1x2xf32>
    %28 = arith.mulf %27, %26 : vector<1x2xf32>
    %29 = arith.addf %24, %28 : vector<1x2xf32>
    %c2 = arith.constant 2 : index
    %30 = memref.load %arg1[%c2] : memref<32xf32, #tpu.memory_space<smem>>
    %31 = vector.extract_strided_slice %19 {offsets = [0, 2], sizes = [1, 2], strides = [1, 1]} : vector<1x4xf32> to vector<1x2xf32>
    %32 = vector.broadcast %30 : f32 to vector<1x2xf32>
    %33 = arith.mulf %32, %31 : vector<1x2xf32>
    %34 = arith.addf %29, %33 : vector<1x2xf32>
    %c3 = arith.constant 3 : index
    %35 = memref.load %arg1[%c3] : memref<32xf32, #tpu.memory_space<smem>>
    %36 = vector.extract_strided_slice %20 {offsets = [0, 0], sizes = [1, 2], strides = [1, 1]} : vector<1x4xf32> to vector<1x2xf32>
    %37 = vector.broadcast %35 : f32 to vector<1x2xf32>
    %38 = arith.mulf %37, %36 : vector<1x2xf32>
    %c4 = arith.constant 4 : index
    %39 = memref.load %arg1[%c4] : memref<32xf32, #tpu.memory_space<smem>>
    %40 = vector.extract_strided_slice %20 {offsets = [0, 1], sizes = [1, 2], strides = [1, 1]} : vector<1x4xf32> to vector<1x2xf32>
    %41 = vector.broadcast %39 : f32 to vector<1x2xf32>
    %42 = arith.mulf %41, %40 : vector<1x2xf32>
    %43 = arith.addf %38, %42 : vector<1x2xf32>
    %c5 = arith.constant 5 : index
    %44 = memref.load %arg1[%c5] : memref<32xf32, #tpu.memory_space<smem>>
    %45 = vector.extract_strided_slice %20 {offsets = [0, 2], sizes = [1, 2], strides = [1, 1]} : vector<1x4xf32> to vector<1x2xf32>
    %46 = vector.broadcast %44 : f32 to vector<1x2xf32>
    %47 = arith.mulf %46, %45 : vector<1x2xf32>
    %48 = arith.addf %43, %47 : vector<1x2xf32>
    %c6 = arith.constant 6 : index
    %49 = memref.load %arg1[%c6] : memref<32xf32, #tpu.memory_space<smem>>
    %50 = vector.broadcast %49 : f32 to vector<1x2xf32>
    %51 = arith.addf %34, %50 : vector<1x2xf32>
    %52 = arith.addf %51, %48 : vector<1x2xf32>
    %c0_6 = arith.constant 0 : index
    %c0_7 = arith.constant 0 : index
    %53 = vector.load %arg2[%c0_6, %c0_7] : memref<4x2xf32, #tpu.memory_space<vmem>>, vector<1x2xf32>
    tpu.vector_store %arg2[%c0_6, %c0_7], %52 {strides = array<i32>} : memref<4x2xf32, #tpu.memory_space<vmem>>, vector<1x2xf32>,
    %c8 = arith.constant 8 : index
    %54 = memref.load %arg1[%c8] : memref<32xf32, #tpu.memory_space<smem>>
    %55 = vector.extract_strided_slice %19 {offsets = [0, 0], sizes = [1, 2], strides = [1, 1]} : vector<1x4xf32> to vector<1x2xf32>
    %56 = vector.broadcast %54 : f32 to vector<1x2xf32>
    %57 = arith.mulf %56, %55 : vector<1x2xf32>
    %c9 = arith.constant 9 : index
    %58 = memref.load %arg1[%c9] : memref<32xf32, #tpu.memory_space<smem>>
    %59 = vector.extract_strided_slice %19 {offsets = [0, 1], sizes = [1, 2], strides = [1, 1]} : vector<1x4xf32> to vector<1x2xf32>
    %60 = vector.broadcast %58 : f32 to vector<1x2xf32>
    %61 = arith.mulf %60, %59 : vector<1x2xf32>
    %62 = arith.addf %57, %61 : vector<1x2xf32>
    %c10 = arith.constant 10 : index
    %63 = memref.load %arg1[%c10] : memref<32xf32, #tpu.memory_space<smem>>
    %64 = vector.extract_strided_slice %19 {offsets = [0, 2], sizes = [1, 2], strides = [1, 1]} : vector<1x4xf32> to vector<1x2xf32>
    %65 = vector.broadcast %63 : f32 to vector<1x2xf32>
    %66 = arith.mulf %65, %64 : vector<1x2xf32>
    %67 = arith.addf %62, %66 : vector<1x2xf32>
    %c11 = arith.constant 11 : index
    %68 = memref.load %arg1[%c11] : memref<32xf32, #tpu.memory_space<smem>>
    %69 = vector.extract_strided_slice %20 {offsets = [0, 0], sizes = [1, 2], strides = [1, 1]} : vector<1x4xf32> to vector<1x2xf32>
    %70 = vector.broadcast %68 : f32 to vector<1x2xf32>
    %71 = arith.mulf %70, %69 : vector<1x2xf32>
    %c12 = arith.constant 12 : index
    %72 = memref.load %arg1[%c12] : memref<32xf32, #tpu.memory_space<smem>>
    %73 = vector.extract_strided_slice %20 {offsets = [0, 1], sizes = [1, 2], strides = [1, 1]} : vector<1x4xf32> to vector<1x2xf32>
    %74 = vector.broadcast %72 : f32 to vector<1x2xf32>
    %75 = arith.mulf %74, %73 : vector<1x2xf32>
    %76 = arith.addf %71, %75 : vector<1x2xf32>
    %c13 = arith.constant 13 : index
    %77 = memref.load %arg1[%c13] : memref<32xf32, #tpu.memory_space<smem>>
    %78 = vector.extract_strided_slice %20 {offsets = [0, 2], sizes = [1, 2], strides = [1, 1]} : vector<1x4xf32> to vector<1x2xf32>
    %79 = vector.broadcast %77 : f32 to vector<1x2xf32>
    %80 = arith.mulf %79, %78 : vector<1x2xf32>
    %81 = arith.addf %76, %80 : vector<1x2xf32>
    %c14 = arith.constant 14 : index
    %82 = memref.load %arg1[%c14] : memref<32xf32, #tpu.memory_space<smem>>
    %83 = vector.broadcast %82 : f32 to vector<1x2xf32>
    %84 = arith.addf %67, %83 : vector<1x2xf32>
    %85 = arith.addf %84, %81 : vector<1x2xf32>
    %c1_8 = arith.constant 1 : index
    %c0_9 = arith.constant 0 : index
    %86 = vector.load %arg2[%c1_8, %c0_9] : memref<4x2xf32, #tpu.memory_space<vmem>>, vector<1x2xf32>
    tpu.vector_store %arg2[%c1_8, %c0_9], %85 {strides = array<i32>} : memref<4x2xf32, #tpu.memory_space<vmem>>, vector<1x2xf32>,
    %c16 = arith.constant 16 : index
    %87 = memref.load %arg1[%c16] : memref<32xf32, #tpu.memory_space<smem>>
    %88 = vector.extract_strided_slice %19 {offsets = [0, 0], sizes = [1, 2], strides = [1, 1]} : vector<1x4xf32> to vector<1x2xf32>
    %89 = vector.broadcast %87 : f32 to vector<1x2xf32>
    %90 = arith.mulf %89, %88 : vector<1x2xf32>
    %c17 = arith.constant 17 : index
    %91 = memref.load %arg1[%c17] : memref<32xf32, #tpu.memory_space<smem>>
    %92 = vector.extract_strided_slice %19 {offsets = [0, 1], sizes = [1, 2], strides = [1, 1]} : vector<1x4xf32> to vector<1x2xf32>
    %93 = vector.broadcast %91 : f32 to vector<1x2xf32>
    %94 = arith.mulf %93, %92 : vector<1x2xf32>
    %95 = arith.addf %90, %94 : vector<1x2xf32>
    %c18 = arith.constant 18 : index
    %96 = memref.load %arg1[%c18] : memref<32xf32, #tpu.memory_space<smem>>
    %97 = vector.extract_strided_slice %19 {offsets = [0, 2], sizes = [1, 2], strides = [1, 1]} : vector<1x4xf32> to vector<1x2xf32>
    %98 = vector.broadcast %96 : f32 to vector<1x2xf32>
    %99 = arith.mulf %98, %97 : vector<1x2xf32>
    %100 = arith.addf %95, %99 : vector<1x2xf32>
    %c19 = arith.constant 19 : index
    %101 = memref.load %arg1[%c19] : memref<32xf32, #tpu.memory_space<smem>>
    %102 = vector.extract_strided_slice %20 {offsets = [0, 0], sizes = [1, 2], strides = [1, 1]} : vector<1x4xf32> to vector<1x2xf32>
    %103 = vector.broadcast %101 : f32 to vector<1x2xf32>
    %104 = arith.mulf %103, %102 : vector<1x2xf32>
    %c20 = arith.constant 20 : index
    %105 = memref.load %arg1[%c20] : memref<32xf32, #tpu.memory_space<smem>>
    %106 = vector.extract_strided_slice %20 {offsets = [0, 1], sizes = [1, 2], strides = [1, 1]} : vector<1x4xf32> to vector<1x2xf32>
    %107 = vector.broadcast %105 : f32 to vector<1x2xf32>
    %108 = arith.mulf %107, %106 : vector<1x2xf32>
    %109 = arith.addf %104, %108 : vector<1x2xf32>
    %c21 = arith.constant 21 : index
    %110 = memref.load %arg1[%c21] : memref<32xf32, #tpu.memory_space<smem>>
    %111 = vector.extract_strided_slice %20 {offsets = [0, 2], sizes = [1, 2], strides = [1, 1]} : vector<1x4xf32> to vector<1x2xf32>
    %112 = vector.broadcast %110 : f32 to vector<1x2xf32>
    %113 = arith.mulf %112, %111 : vector<1x2xf32>
    %114 = arith.addf %109, %113 : vector<1x2xf32>
    %c22 = arith.constant 22 : index
    %115 = memref.load %arg1[%c22] : memref<32xf32, #tpu.memory_space<smem>>
    %116 = vector.broadcast %115 : f32 to vector<1x2xf32>
    %117 = arith.addf %100, %116 : vector<1x2xf32>
    %118 = arith.addf %117, %114 : vector<1x2xf32>
    %c2_10 = arith.constant 2 : index
    %c0_11 = arith.constant 0 : index
    %119 = vector.load %arg2[%c2_10, %c0_11] : memref<4x2xf32, #tpu.memory_space<vmem>>, vector<1x2xf32>
    tpu.vector_store %arg2[%c2_10, %c0_11], %118 {strides = array<i32>} : memref<4x2xf32, #tpu.memory_space<vmem>>, vector<1x2xf32>,
    %c24 = arith.constant 24 : index
    %120 = memref.load %arg1[%c24] : memref<32xf32, #tpu.memory_space<smem>>
    %121 = vector.extract_strided_slice %19 {offsets = [0, 0], sizes = [1, 2], strides = [1, 1]} : vector<1x4xf32> to vector<1x2xf32>
    %122 = vector.broadcast %120 : f32 to vector<1x2xf32>
    %123 = arith.mulf %122, %121 : vector<1x2xf32>
    %c25 = arith.constant 25 : index
    %124 = memref.load %arg1[%c25] : memref<32xf32, #tpu.memory_space<smem>>
    %125 = vector.extract_strided_slice %19 {offsets = [0, 1], sizes = [1, 2], strides = [1, 1]} : vector<1x4xf32> to vector<1x2xf32>
    %126 = vector.broadcast %124 : f32 to vector<1x2xf32>
    %127 = arith.mulf %126, %125 : vector<1x2xf32>
    %128 = arith.addf %123, %127 : vector<1x2xf32>
    %c26 = arith.constant 26 : index
    %129 = memref.load %arg1[%c26] : memref<32xf32, #tpu.memory_space<smem>>
    %130 = vector.extract_strided_slice %19 {offsets = [0, 2], sizes = [1, 2], strides = [1, 1]} : vector<1x4xf32> to vector<1x2xf32>
    %131 = vector.broadcast %129 : f32 to vector<1x2xf32>
    %132 = arith.mulf %131, %130 : vector<1x2xf32>
    %133 = arith.addf %128, %132 : vector<1x2xf32>
    %c27 = arith.constant 27 : index
    %134 = memref.load %arg1[%c27] : memref<32xf32, #tpu.memory_space<smem>>
    %135 = vector.extract_strided_slice %20 {offsets = [0, 0], sizes = [1, 2], strides = [1, 1]} : vector<1x4xf32> to vector<1x2xf32>
    %136 = vector.broadcast %134 : f32 to vector<1x2xf32>
    %137 = arith.mulf %136, %135 : vector<1x2xf32>
    %c28 = arith.constant 28 : index
    %138 = memref.load %arg1[%c28] : memref<32xf32, #tpu.memory_space<smem>>
    %139 = vector.extract_strided_slice %20 {offsets = [0, 1], sizes = [1, 2], strides = [1, 1]} : vector<1x4xf32> to vector<1x2xf32>
    %140 = vector.broadcast %138 : f32 to vector<1x2xf32>
    %141 = arith.mulf %140, %139 : vector<1x2xf32>
    %142 = arith.addf %137, %141 : vector<1x2xf32>
    %c29 = arith.constant 29 : index
    %143 = memref.load %arg1[%c29] : memref<32xf32, #tpu.memory_space<smem>>
    %144 = vector.extract_strided_slice %20 {offsets = [0, 2], sizes = [1, 2], strides = [1, 1]} : vector<1x4xf32> to vector<1x2xf32>
    %145 = vector.broadcast %143 : f32 to vector<1x2xf32>
    %146 = arith.mulf %145, %144 : vector<1x2xf32>
    %147 = arith.addf %142, %146 : vector<1x2xf32>
    %c30 = arith.constant 30 : index
    %148 = memref.load %arg1[%c30] : memref<32xf32, #tpu.memory_space<smem>>
    %149 = vector.broadcast %148 : f32 to vector<1x2xf32>
    %150 = arith.addf %133, %149 : vector<1x2xf32>
    %151 = arith.addf %150, %147 : vector<1x2xf32>
    %c3_12 = arith.constant 3 : index
    %c0_13 = arith.constant 0 : index
    %152 = vector.load %arg2[%c3_12, %c0_13] : memref<4x2xf32, #tpu.memory_space<vmem>>, vector<1x2xf32>
    tpu.vector_store %arg2[%c3_12, %c0_13], %151 {strides = array<i32>} : memref<4x2xf32, #tpu.memory_space<vmem>>, vector<1x2xf32>,
    return
  }
}

</mosaic_0001>

<llo_original>
// kernel: model_forward.1
$region0: #{model_forward.1}
  #allocation0 [shape = 'u32[]', space=smem, size = 0x4, offset = 0x4, fixed_abs, tag = 'smem constant byte address 0x4 - core index']
  #allocation1 [shape = 'u32[144,128]{1,0:T(1,128)}', space=vmem, size = 0x12000, scoped, tag = 'internal scratch']
  %s0 = inlined_call_operand.vmem [shape: f32[2,4], index: 0, kind: input, shape index: {}]
  %s1 = inlined_call_operand.vmem [shape: f32[32], index: 1, kind: input, shape index: {}]
  %s2 = inlined_call_operand.vmem [shape: f32[4,2], index: 2, kind: output, shape index: {}]
  %s3 = sld [smem:[#allocation0]]
  $region22: #{model_forward.1} parent=0
    _
  %s5 = ssub.s32 1, %s3
  %s6 = scalar_select 0, %s5, %s3
  $region1: #{model_forward.1} parent=0
    #allocation2 [shape = 'u8[512]{0}', space=smem, size = 0x200, scoped, tag = 'input window, operand 1, single buffered']
    #allocation3 [shape = 's32[1]{0}', space=sflag, size = 0x4, scoped, tag = 'scoped memory for model_forward.1']
    %7 = vsyncpa [#allocation3], 0
    // Predicated region
    $region2: #{model_forward.1} parent=1 // pred_check
      _
    $region3: #{model_forward.1} parent=1 // pred_check_branch
      %9 = sbr.rel (0) target = $region5
    $region4: #{model_forward.1} parent=1 // pred_region
      _
    $region5: #{model_forward.1} parent=1 // pred_fallthru
      _
    // Predicated region
    $region6: #{model_forward.1} parent=1 // pred_check
      _
    $region7: #{model_forward.1} parent=1 // pred_check_branch
      %11 = sbr.rel (0) target = $region9
    $region8: #{model_forward.1} parent=1 // pred_region
      %s13 = ssub.s32 16, 16
      %14 = vsyncadd [#allocation3], %s13
      %s16 = sshll.u32 %s1, 4
      %s17 = int_to_ptr.vmem [resolvable:$true] %s16
      %19 = dma.vmem_to_smem %s17, 16, [#allocation2], [#allocation3]
    $region9: #{model_forward.1} parent=1 // pred_fallthru
      _
    // Predicated region
    $region10: #{model_forward.1} parent=1 // pred_check
      _
    $region11: #{model_forward.1} parent=1 // pred_check_branch
      %21 = sbr.rel (0) target = $region13
    $region12: #{model_forward.1} parent=1 // pred_region
      %22 = dma.done [#allocation3], 16
    $region13: #{model_forward.1} parent=1 // pred_fallthru
      _
    %23 = sfence
    %v24 = vld [vmem:[%s0] sm:$0x3]
    %vm25 = vcmask 25600
    %v26 = vsel %vm25, %v24, 0.0
    %27 = vadd.xlane.f32.xlu0 %v26
    %v28 = vpop.xlane.xlu0 %27
    %v29 = vmul.f32 %v28, 0.25
    %v30 = vmul.f32 %v24, %v24
    %v31 = vsel %vm25, %v30, 0.0
    %32 = vadd.xlane.f32.xlu0 %v31
    %v33 = vpop.xlane.xlu0 %32
    %v34 = vmul.f32 %v33, 0.25
    %v35 = vmul.f32 %v29, %v29
    %v36 = vsub.f32 %v34, %v35
    %v37 = vsub.f32 %v24, %v29
    %v38 = vadd.f32 %v36, 1e-05
    %v39 = vrsqrt.pop %v38
    %v40 = vmul.f32 %v37, %v39
    %s41 = sld [smem:[#allocation2]]
    %v42 = vstv %s41
    %v43 = vmul.f32 %v42, %v40
    %s44 = sld [smem:[#allocation2 + $0x1]]
    %v45 = vstv %s44
    %v46 = vmul.f32 %v45, %v40
    %48 = vrot.lane.b32.xlu0 %v46, 127
    %v49 = vpop.permute.xlu0 %48
    %v51 = vadd.f32 %v43, %v49
    %s52 = sld [smem:[#allocation2 + $0x2]]
    %v53 = vstv %s52
    %v54 = vmul.f32 %v53, %v40
    %56 = vrot.lane.b32.xlu0 %v54, 126
    %v57 = vpop.permute.xlu0 %56
    %v59 = vadd.f32 %v51, %v57
    %s60 = sld [smem:[#allocation2 + $0x3]]
    %v61 = vstv %s60
    %v62 = vmul.f32 %v61, %v40
    %s63 = sld [smem:[#allocation2 + $0x4]]
    %v64 = vstv %s63
    %v65 = vmul.f32 %v64, %v40
    %67 = vrot.lane.b32.xlu0 %v65, 127
    %v68 = vpop.permute.xlu0 %67
    %v70 = vadd.f32 %v62, %v68
    %s71 = sld [smem:[#allocation2 + $0x5]]
    %v72 = vstv %s71
    %v73 = vmul.f32 %v72, %v40
    %75 = vrot.lane.b32.xlu0 %v73, 126
    %v76 = vpop.permute.xlu0 %75
    %v78 = vadd.f32 %v70, %v76
    %s79 = sld [smem:[#allocation2 + $0x6]]
    %v80 = vstv %s79
    %v81 = vadd.f32 %v59, %v80
    %v83 = vrot.slane %v78, 1
    %v85 = vadd.f32 %v81, %v83
    %vm86 = vcmask 8192
    %87 = vst.msk [vmem:[%s2] sm:$0x1] %vm86, %v85
    %s88 = sld [smem:[#allocation2 + $0x8]]
    %v89 = vstv %s88
    %v90 = vmul.f32 %v89, %v40
    %s91 = sld [smem:[#allocation2 + $0x9]]
    %v92 = vstv %s91
    %v93 = vmul.f32 %v92, %v40
    %95 = vrot.lane.b32.xlu0 %v93, 127
    %v96 = vpop.permute.xlu0 %95
    %v98 = vadd.f32 %v90, %v96
    %s99 = sld [smem:[#allocation2 + $0xa]]
    %v100 = vstv %s99
    %v101 = vmul.f32 %v100, %v40
    %103 = vrot.lane.b32.xlu0 %v101, 126
    %v104 = vpop.permute.xlu0 %103
    %v106 = vadd.f32 %v98, %v104
    %s107 = sld [smem:[#allocation2 + $0xb]]
    %v108 = vstv %s107
    %v109 = vmul.f32 %v108, %v40
    %s110 = sld [smem:[#allocation2 + $0xc]]
    %v111 = vstv %s110
    %v112 = vmul.f32 %v111, %v40
    %114 = vrot.lane.b32.xlu0 %v112, 127
    %v115 = vpop.permute.xlu0 %114
    %v117 = vadd.f32 %v109, %v115
    %s118 = sld [smem:[#allocation2 + $0xd]]
    %v119 = vstv %s118
    %v120 = vmul.f32 %v119, %v40
    %122 = vrot.lane.b32.xlu0 %v120, 126
    %v123 = vpop.permute.xlu0 %122
    %v125 = vadd.f32 %v117, %v123
    %s126 = sld [smem:[#allocation2 + $0xe]]
    %v127 = vstv %s126
    %v128 = vadd.f32 %v106, %v127
    %v130 = vrot.slane %v125, 1
    %v132 = vadd.f32 %v128, %v130
    %133 = vst.msk [vmem:[%s2 + $0x1] sm:$0x1] %vm86, %v132
    %s134 = sld [smem:[#allocation2 + $0x10]]
    %v135 = vstv %s134
    %v136 = vmul.f32 %v135, %v40
    %s137 = sld [smem:[#allocation2 + $0x11]]
    %v138 = vstv %s137
    %v139 = vmul.f32 %v138, %v40
    %141 = vrot.lane.b32.xlu0 %v139, 127
    %v142 = vpop.permute.xlu0 %141
    %v144 = vadd.f32 %v136, %v142
    %s145 = sld [smem:[#allocation2 + $0x12]]
    %v146 = vstv %s145
    %v147 = vmul.f32 %v146, %v40
    %149 = vrot.lane.b32.xlu0 %v147, 126
    %v150 = vpop.permute.xlu0 %149
    %v152 = vadd.f32 %v144, %v150
    %s153 = sld [smem:[#allocation2 + $0x13]]
    %v154 = vstv %s153
    %v155 = vmul.f32 %v154, %v40
    %s156 = sld [smem:[#allocation2 + $0x14]]
    %v157 = vstv %s156
    %v158 = vmul.f32 %v157, %v40
    %160 = vrot.lane.b32.xlu0 %v158, 127
    %v161 = vpop.permute.xlu0 %160
    %v163 = vadd.f32 %v155, %v161
    %s164 = sld [smem:[#allocation2 + $0x15]]
    %v165 = vstv %s164
    %v166 = vmul.f32 %v165, %v40
    %168 = vrot.lane.b32.xlu0 %v166, 126
    %v169 = vpop.permute.xlu0 %168
    %v171 = vadd.f32 %v163, %v169
    %s172 = sld [smem:[#allocation2 + $0x16]]
    %v173 = vstv %s172
    %v174 = vadd.f32 %v152, %v173
    %v176 = vrot.slane %v171, 1
    %v178 = vadd.f32 %v174, %v176
    %179 = vst.msk [vmem:[%s2 + $0x2] sm:$0x1] %vm86, %v178
    %s180 = sld [smem:[#allocation2 + $0x18]]
    %v181 = vstv %s180
    %v182 = vmul.f32 %v181, %v40
    %s183 = sld [smem:[#allocation2 + $0x19]]
    %v184 = vstv %s183
    %v185 = vmul.f32 %v184, %v40
    %187 = vrot.lane.b32.xlu0 %v185, 127
    %v188 = vpop.permute.xlu0 %187
    %v190 = vadd.f32 %v182, %v188
    %s191 = sld [smem:[#allocation2 + $0x1a]]
    %v192 = vstv %s191
    %v193 = vmul.f32 %v192, %v40
    %195 = vrot.lane.b32.xlu0 %v193, 126
    %v196 = vpop.permute.xlu0 %195
    %v198 = vadd.f32 %v190, %v196
    %s199 = sld [smem:[#allocation2 + $0x1b]]
    %v200 = vstv %s199
    %v201 = vmul.f32 %v200, %v40
    %s202 = sld [smem:[#allocation2 + $0x1c]]
    %v203 = vstv %s202
    %v204 = vmul.f32 %v203, %v40
    %206 = vrot.lane.b32.xlu0 %v204, 127
    %v207 = vpop.permute.xlu0 %206
    %v209 = vadd.f32 %v201, %v207
    %s210 = sld [smem:[#allocation2 + $0x1d]]
    %v211 = vstv %s210
    %v212 = vmul.f32 %v211, %v40
    %214 = vrot.lane.b32.xlu0 %v212, 126
    %v215 = vpop.permute.xlu0 %214
    %v217 = vadd.f32 %v209, %v215
    %s218 = sld [smem:[#allocation2 + $0x1e]]
    %v219 = vstv %s218
    %v220 = vadd.f32 %v198, %v219
    %v222 = vrot.slane %v217, 1
    %v224 = vadd.f32 %v220, %v222
    %225 = vst.msk [vmem:[%s2 + $0x3] sm:$0x1] %vm86, %v224
    // Predicated region
    $region14: #{model_forward.1} parent=1 // pred_check
      _
    $region15: #{model_forward.1} parent=1 // pred_check_branch
      %227 = sbr.rel (0) target = $region17
    $region16: #{model_forward.1} parent=1 // pred_region
      _
    $region17: #{model_forward.1} parent=1 // pred_fallthru
      _
    // Predicated region
    $region18: #{model_forward.1} parent=1 // pred_check
      _
    $region19: #{model_forward.1} parent=1 // pred_check_branch
      %229 = sbr.rel (0) target = $region21
    $region20: #{model_forward.1} parent=1 // pred_region
      _
    $region21: #{model_forward.1} parent=1 // pred_fallthru
      _
    %230 = vsyncpa [#allocation3], 1

</llo_original>
